<compile_context>
chip_gen: v7x
topology: tpu7x:2x2x1
jax: 0.10.0
libtpu: 0.0.40
codegen_flags: <defaults>
</compile_context>

<pallas_src>
import functools

import jax
import jax.numpy as jnp
from jax.experimental import pallas as pl
from jax.experimental.pallas import tpu as pltpu

EPS = 1e-5  # nn.BatchNorm2d default eps


# ----------------------------------------------------------------------------
# Wrapper-side helpers
# ----------------------------------------------------------------------------
def _make_tap_masks(H, W):
    """(9, 1, H*W) f32 multiplicative validity masks for the 3x3 SAME-conv taps."""
    HW = H * W
    p = jnp.arange(HW, dtype=jnp.int32)
    yy = p // W
    xx = p - yy * W
    masks = []
    for ky in range(3):
        for kx in range(3):
            dy, dx = ky - 1, kx - 1
            valid = ((yy + dy >= 0) & (yy + dy < H)
                     & (xx + dx >= 0) & (xx + dx < W))
            masks.append(valid.astype(jnp.float32).reshape(1, HW))
    return jnp.stack(masks, axis=0)


def _fold_bn(sums, sqs, count, gamma, beta):
    """Fold training-mode BN (biased variance) into per-channel scale/shift columns."""
    mean = sums / count
    var = jnp.maximum(sqs / count - mean * mean, 0.0)  # E[x^2]-E[x]^2; fine at this scale
    inv_std = jax.lax.rsqrt(var + EPS)
    scale = gamma.reshape(-1, 1).astype(jnp.float32) * inv_std
    shift = beta.reshape(-1, 1).astype(jnp.float32) - mean * scale
    return scale, shift


def _pick_batch_block(N, Cin, Cout, HW):
    """Largest divisor of N whose per-step working set fits a modest VMEM budget,
    while keeping >= 2 grid steps so the batch axis can still be sharded across
    TensorCores on v7x."""
    budget = 8 << 20  # conservative; well under v7x's 32 MiB scoped default
    per_sample = ((Cin + 2 * Cout) * HW * 4        # x + y in f32
                  + 9 * max(Cin, Cout) * HW * 2    # bf16 stacked tap slab
                  + Cout * HW * 2) * 2             # bf16 y1 + double-buffer slack
    cap = max(1, budget // max(per_sample, 1))
    if N >= 2:
        cap = min(cap, N // 2)
    b = 1
    for d in range(1, N + 1):
        if N % d == 0 and d <= cap:
            b = d
    return max(b, 1)


# ----------------------------------------------------------------------------
# In-kernel helpers
# ----------------------------------------------------------------------------
def _stacked_taps_bf16(h, mask_ref, H, W):
    """h: (Cin, H*W) f32 -> (9*Cin, H*W) bf16 stacked shifted+masked tap operands."""
    HW = H * W
    taps = []
    for ky in range(3):
        for kx in range(3):
            t = ky * 3 + kx
            s = (ky - 1) * W + (kx - 1)      # flat source offset for this tap
            if s == 0:                        # center tap: no shift, no mask
                taps.append(h)
            else:
                # shifted[:, p] == h[:, p + s]; out-of-image sources masked to 0.
                shifted = pltpu.roll(h, shift=(-s) % HW, axis=1)
                taps.append(shifted * mask_ref[t])
    # Single f32 concat (sublane-only) + one cast keeps MXU operands in bf16.
    return jnp.concatenate(taps, axis=0).astype(jnp.bfloat16)


def _sum_and_sumsq(z):
    """Per-row sum and sum-of-squares of z (C, HW) via one MXU matmul -> (2C, 1) f32."""
    hw = z.shape[-1]
    ones_col = jnp.ones((hw, 1), jnp.float32)
    zz = jnp.concatenate([z, z * z], axis=0)
    return jnp.dot(zz, ones_col, preferred_element_type=jnp.float32)


# ----------------------------------------------------------------------------
# Kernels (all grid axes are "parallel": per-block partial-sum outputs, no
# resident accumulators)
# ----------------------------------------------------------------------------
def _bn1_stats_kernel(x_ref, part_ref, *, b_blk):
    """Per-block partial per-channel sum / sum-of-squares of x."""
    acc = jnp.zeros(part_ref.shape[1:], jnp.float32)          # (2*Cin, 1)
    for i in range(b_blk):
        acc = acc + _sum_and_sumsq(x_ref[i].astype(jnp.float32))
    part_ref[0] = acc                                          # tiny masked store; OK


def _bn_relu_conv1_stats_kernel(x_ref, scale_ref, shift_ref, w_ref, b_ref, mask_ref,
                                y_ref, part_ref, *, H, W, b_blk):
    """Fused BN1(folded) + ReLU + conv1 (single fused-tap bf16 matmul) + BN2 partial stats."""
    acc = jnp.zeros(part_ref.shape[1:], jnp.float32)           # (2*Cout, 1)
    w = w_ref[...]                                              # (Cout, 9*Cin) bf16
    for i in range(b_blk):
        x = x_ref[i].astype(jnp.float32)                        # (Cin, HW)
        h = jnp.maximum(x * scale_ref[...] + shift_ref[...], 0.0)
        taps = _stacked_taps_bf16(h, mask_ref, H, W)            # (9*Cin, HW) bf16
        y = jnp.dot(w, taps, preferred_element_type=jnp.float32) + b_ref[...]
        y_ref[i] = y.astype(y_ref.dtype)                        # bf16 intermediate
        acc = acc + _sum_and_sumsq(y)                           # stats from f32 values
    part_ref[0] = acc


def _bn_relu_conv2_kernel(x_ref, scale_ref, shift_ref, w_ref, b_ref, mask_ref,
                          o_ref, *, H, W, b_blk):
    """Fused BN2(folded) + ReLU + conv2 (single fused-tap bf16 matmul)."""
    w = w_ref[...]                                              # (Cout, 9*Cout) bf16
    for i in range(b_blk):
        h = jnp.maximum(x_ref[i].astype(jnp.float32) * scale_ref[...] + shift_ref[...], 0.0)
        taps = _stacked_taps_bf16(h, mask_ref, H, W)
        o_ref[i] = (jnp.dot(w, taps, preferred_element_type=jnp.float32)
                    + b_ref[...]).astype(o_ref.dtype)


# ----------------------------------------------------------------------------
# Wrapper
# ----------------------------------------------------------------------------
def convblock_forward(x_nchw, g1, be1, w1, b1, g2, be2, w2, b2, *, b_blk=None):
    """Forward pass of ConvBlock (training-mode BN) using Pallas TPU kernels."""
    N, Cin, H, W = x_nchw.shape
    Cout = w1.shape[0]
    HW = H * W
    count = float(N * HW)

    if b_blk is None:
        b_blk = _pick_batch_block(N, Cin, Cout, HW)
    NB = N // b_blk

    # Native layout: (N, C, H, W) -> (N, C, H*W) is a free, contiguous reshape.
    x3 = x_nchw.reshape(N, Cin, HW).astype(jnp.float32)
    mask = _make_tap_masks(H, W)                               # (9, 1, HW) f32

    # ---- Pass A: BN1 partial batch statistics (parallel over batch blocks) ----
    partsA = pl.pallas_call(
        functools.partial(_bn1_stats_kernel, b_blk=b_blk),
        out_shape=jax.ShapeDtypeStruct((NB, 2 * Cin, 1), jnp.float32),
        grid_spec=pltpu.PrefetchScalarGridSpec(
            num_scalar_prefetch=0,
            grid=(NB,),
            in_specs=[pl.BlockSpec((b_blk, Cin, HW), lambda n: (n, 0, 0))],
            out_specs=pl.BlockSpec((1, 2 * Cin, 1), lambda n: (n, 0, 0)),
        ),
        compiler_params=pltpu.CompilerParams(dimension_semantics=("parallel",)),
    )(x3)
    statsA = jnp.sum(partsA, axis=0)                            # (2*Cin, 1)
    scale1, shift1 = _fold_bn(statsA[:Cin], statsA[Cin:], count, g1, be1)

    # Conv1 weights (Cout, Cin, 3, 3) -> (Cout, 9*Cin) bf16 matching tap order t*Cin+c.
    w1_flat = jnp.transpose(w1, (0, 2, 3, 1)).reshape(Cout, 9 * Cin).astype(jnp.bfloat16)
    b1_col = b1.reshape(Cout, 1).astype(jnp.float32)

    # ---- Pass B: fused BN1 + ReLU + conv1 (bf16 output), with BN2 partial stats ----
    y1, partsB = pl.pallas_call(
        functools.partial(_bn_relu_conv1_stats_kernel, H=H, W=W, b_blk=b_blk),
        out_shape=(jax.ShapeDtypeStruct((N, Cout, HW), jnp.bfloat16),
                   jax.ShapeDtypeStruct((NB, 2 * Cout, 1), jnp.float32)),
        grid_spec=pltpu.PrefetchScalarGridSpec(
            num_scalar_prefetch=0,
            grid=(NB,),
            in_specs=[
                pl.BlockSpec((b_blk, Cin, HW), lambda n: (n, 0, 0)),
                pl.BlockSpec((Cin, 1), lambda n: (0, 0)),
                pl.BlockSpec((Cin, 1), lambda n: (0, 0)),
                pl.BlockSpec((Cout, 9 * Cin), lambda n: (0, 0)),
                pl.BlockSpec((Cout, 1), lambda n: (0, 0)),
                pl.BlockSpec((9, 1, HW), lambda n: (0, 0, 0)),
            ],
            out_specs=(
                pl.BlockSpec((b_blk, Cout, HW), lambda n: (n, 0, 0)),
                pl.BlockSpec((1, 2 * Cout, 1), lambda n: (n, 0, 0)),
            ),
        ),
        compiler_params=pltpu.CompilerParams(dimension_semantics=("parallel",)),
    )(x3, scale1, shift1, w1_flat, b1_col, mask)
    statsB = jnp.sum(partsB, axis=0)                            # (2*Cout, 1)
    scale2, shift2 = _fold_bn(statsB[:Cout], statsB[Cout:], count, g2, be2)

    w2_flat = jnp.transpose(w2, (0, 2, 3, 1)).reshape(Cout, 9 * Cout).astype(jnp.bfloat16)
    b2_col = b2.reshape(Cout, 1).astype(jnp.float32)

    # ---- Pass C: fused BN2 + ReLU + conv2 ----
    out3 = pl.pallas_call(
        functools.partial(_bn_relu_conv2_kernel, H=H, W=W, b_blk=b_blk),
        out_shape=jax.ShapeDtypeStruct((N, Cout, HW), jnp.float32),
        grid_spec=pltpu.PrefetchScalarGridSpec(
            num_scalar_prefetch=0,
            grid=(NB,),
            in_specs=[
                pl.BlockSpec((b_blk, Cout, HW), lambda n: (n, 0, 0)),
                pl.BlockSpec((Cout, 1), lambda n: (0, 0)),
                pl.BlockSpec((Cout, 1), lambda n: (0, 0)),
                pl.BlockSpec((Cout, 9 * Cout), lambda n: (0, 0)),
                pl.BlockSpec((Cout, 1), lambda n: (0, 0)),
                pl.BlockSpec((9, 1, HW), lambda n: (0, 0, 0)),
            ],
            out_specs=pl.BlockSpec((b_blk, Cout, HW), lambda n: (n, 0, 0)),
        ),
        compiler_params=pltpu.CompilerParams(dimension_semantics=("parallel",)),
    )(y1, scale2, shift2, w2_flat, b2_col, mask)

    # Free reshape back to NCHW (no transpose).
    return out3.reshape(N, Cout, H, W)


# ----------------------------------------------------------------------------
# Pure-JAX f32 reference of the module semantics
# ----------------------------------------------------------------------------
def _reference_forward(x, g1, be1, w1, b1, g2, be2, w2, b2):
    def bn_relu(z, g, b):
        m = jnp.mean(z, axis=(0, 2, 3), keepdims=True)
        v = jnp.mean((z - m) ** 2, axis=(0, 2, 3), keepdims=True)
        zn = (z - m) * jax.lax.rsqrt(v + EPS)
        zn = zn * g[None, :, None, None] + b[None, :, None, None]
        return jnp.maximum(zn, 0.0)

    def conv3x3(z, w, b):
        y = jax.lax.conv_general_dilated(
            z, w, window_strides=(1, 1), padding="SAME",
            dimension_numbers=("NCHW", "OIHW", "NCHW"))
        return y + b[None, :, None, None]

    h = conv3x3(bn_relu(x.astype(jnp.float32), g1, be1), w1, b1)
    return conv3x3(bn_relu(h, g2, be2), w2, b2)


if __name__ == "__main__":
    in_channels, out_channels = 4, 8
    N, H, W = 2, 16, 16

    key = jax.random.PRNGKey(0)
    kx, kw1, kb1, kw2, kb2 = jax.random.split(key, 5)

    x = jax.random.normal(kx, (N, in_channels, H, W), dtype=jnp.float32)

    # Deterministic parameters (shapes match the PyTorch module).
    g1 = jnp.ones((in_channels,), jnp.float32)               # BN1 weight default
    be1 = jnp.zeros((in_channels,), jnp.float32)             # BN1 bias default
    w1 = 0.1 * jax.random.normal(kw1, (out_channels, in_channels, 3, 3), jnp.float32)
    b1 = 0.1 * jax.random.normal(kb1, (out_channels,), jnp.float32)
    g2 = jnp.ones((out_channels,), jnp.float32)               # BN2 weight default
    be2 = jnp.zeros((out_channels,), jnp.float32)             # BN2 bias default
    w2 = 0.1 * jax.random.normal(kw2, (out_channels, out_channels, 3, 3), jnp.float32)
    b2 = 0.1 * jax.random.normal(kb2, (out_channels,), jnp.float32)

    out = convblock_forward(x, g1, be1, w1, b1, g2, be2, w2, b2)
    out = jax.block_until_ready(out)

    ref = _reference_forward(x, g1, be1, w1, b1, g2, be2, w2, b2)
    assert out.shape == (N, out_channels, H, W)
    # Tolerance accounts for bf16 MXU operands + bf16 intermediate storage
    # (a few 1e-3 absolute error vs. the f32 reference); structural bugs would
    # produce O(0.1-1) errors and still fail.
    max_err = float(jnp.max(jnp.abs(out - ref)))
    assert jnp.allclose(out, ref, atol=3e-2, rtol=3e-2), max_err

    print("KERNEL_OK")
</pallas_src>

<mosaic_0001>
module attributes {stable_mosaic.version = 11 : i64} {
  func.func @_bn1_stats_kernel(%arg0: i32, %arg1: memref<1x4x256xf32, #tpu.memory_space<vmem>>, %arg2: memref<1x8x1xf32, #tpu.memory_space<vmem>>) attributes {dimension_semantics = [#tpu.dimension_semantics<parallel>], iteration_bounds = array<i64: 2>, scalar_prefetch = 0 : i64, scratch_operands = 0 : i64, tpu.core_type = #tpu.core_type<tc>, window_params = [{transform_indices = @transform_0, window_bounds = array<i64: 1, 4, 256>}, {transform_indices = @transform_1, window_bounds = array<i64: 1, 8, 1>}]} {
    %cst = arith.constant 0.000000e+00 : f32
    %0 = vector.broadcast %cst : f32 to vector<8x1xf32>
    %c0 = arith.constant 0 : index
    %c0_0 = arith.constant 0 : index
    %c0_1 = arith.constant 0 : index
    %1 = vector.load %arg1[%c0, %c0_0, %c0_1] : memref<1x4x256xf32, #tpu.memory_space<vmem>>, vector<1x4x256xf32>
    %2 = vector.shape_cast %1 : vector<1x4x256xf32> to vector<4x256xf32>
    %cst_2 = arith.constant 1.000000e+00 : f32
    %3 = vector.broadcast %cst_2 : f32 to vector<256x1xf32>
    %4 = arith.mulf %2, %2 : vector<4x256xf32>
    %5 = tpu.concatenate %2, %4 in 0 : vector<4x256xf32>, vector<4x256xf32> -> vector<8x256xf32>
    %cst_3 = arith.constant dense<0.000000e+00> : vector<8x1xf32>
    %6 = tpu.matmul %5, %3, %cst_3 {dimension_numbers = #tpu.dot_dimension_numbers<[1], [0], [0], [1], [0, 0, 1, 1], [], []>} : vector<8x256xf32>, vector<256x1xf32>, vector<8x1xf32> -> vector<8x1xf32>
    %7 = arith.addf %0, %6 : vector<8x1xf32>
    %c0_4 = arith.constant 0 : index
    %c0_5 = arith.constant 0 : index
    %c0_6 = arith.constant 0 : index
    %8 = vector.load %arg2[%c0_4, %c0_5, %c0_6] : memref<1x8x1xf32, #tpu.memory_space<vmem>>, vector<1x8x1xf32>
    %9 = vector.shape_cast %8 : vector<1x8x1xf32> to vector<8x1xf32>
    %10 = vector.shape_cast %7 : vector<8x1xf32> to vector<1x8x1xf32>
    tpu.vector_store %arg2[%c0_4, %c0_5, %c0_6], %10 {strides = array<i32>} : memref<1x8x1xf32, #tpu.memory_space<vmem>>, vector<1x8x1xf32>,
    return
  }
  func.func @transform_0(%arg0: i32) -> (i32, i32, i32) {
    %c0_i32 = arith.constant 0 : i32
    %c0_i32_0 = arith.constant 0 : i32
    %c0_i32_1 = arith.constant 0 : i32
    return %arg0, %c0_i32, %c0_i32_0 : i32, i32, i32
  }
  func.func @transform_1(%arg0: i32) -> (i32, i32, i32) {
    %c0_i32 = arith.constant 0 : i32
    %c0_i32_0 = arith.constant 0 : i32
    %c0_i32_1 = arith.constant 0 : i32
    return %arg0, %c0_i32, %c0_i32_0 : i32, i32, i32
  }
}

</mosaic_0001>

<llo_original>
// kernel: tpu_custom_call.1
$region0: #{tpu_custom_call.1}
  #allocation0 [shape = 'u32[]', space=smem, size = 0x4, offset = 0x4, fixed_abs, tag = 'smem constant byte address 0x4 - core index']
  #allocation1 [shape = 'u32[144,128]{1,0:T(1,128)}', space=vmem, size = 0x12000, scoped, tag = 'internal scratch']
  %s0 = inlined_call_operand.hbm [shape: f32[2,4,256], index: 0, kind: input, shape index: {}]
  %s1 = inlined_call_operand.vmem [shape: f32[2,8,1], index: 1, kind: output, shape index: {}]
  %s2 = sld [smem:[#allocation0]]
  $region41: #{tpu_custom_call.1} parent=0
    _
  %s4 = ssub.s32 1, %s2
  %s5 = scalar_select 0, %s4, %s2
  $region1: #{tpu_custom_call.1} parent=0
    #allocation2 [shape = 'u8[8192]{0}', space=vmem, size = 0x2000, scoped, tag = 'input window, operand 0']
    #allocation3 [shape = 's32[2]{0}', space=sflag, size = 0x8, scoped, tag = 'scoped memory for tpu_custom_call.1']
    %6 = vsyncpa [#allocation3], 0
    %s7 = scalar_lea.sflag [#allocation3], 1
    %8 = vsyncpa %s7, 0
    loop: start=0, step=1, limit=4
    $region2: #{tpu_custom_call.1} parent=1 // loop_pre_header
      _
    $region3: #{tpu_custom_call.1} parent=1 // loop_header
      %s10 = sphi 0, %s14
      %p11 = scmp.ge.s32.totalorder %s10, 4
      %s20 = sphi 0, %s22
      %s23 = sphi 0, %s20
      %s24 = sphi 0, %s23
      %s40 = sphi 0, %s24
      %s46 = sphi 0, %s48
      %s49 = sphi 0, %s46
      %s50 = sphi 0, %s49
      %s66 = sphi 0, %s50
    $region4: #{tpu_custom_call.1} parent=1 // loop_header_branch
      %13 = sbr.rel (%p11) target = $region8
    $region5: #{tpu_custom_call.1} parent=1 // loop_body
      %s15 = ssub.s32 %s10, 1
      %s16 = ssub.s32 %s10, 2
      %s17 = sadd.s32 %s10, 1
      %s18 = ssub.s32 %s10, %s17
      %p19 = scmp.eq.s32.totalorder %s18, 0
      %s21 = sadd.s32 %s20, 1
      %s22 = scalar_select %p19, %s20, %s21
      %p25 = pneg %p19
      %p26 = scmp.eq.s32.totalorder %s10, 1
      %p27 = por %p25, %p26
      %p28 = scmp.ne.s32.totalorder %s20, %s23
      %p29 = scmp.eq.s32.totalorder %s10, 0
      %p30 = por %p28, %p29
      %p31 = scmp.ne.s32.totalorder %s20, %s23
      %p32 = scmp.eq.s32.totalorder %s15, 1
      %p33 = por %p31, %p32
      %p34 = scmp.ne.s32.totalorder %s23, %s24
      %p35 = scmp.eq.s32.totalorder %s15, 0
      %p36 = por %p34, %p35
      %p37 = scmp.ne.s32.totalorder %s23, %s24
      %p38 = scmp.eq.s32.totalorder %s16, 1
      %p39 = por %p37, %p38
      %p41 = scmp.ne.s32.totalorder %s24, %s40
      %p42 = scmp.eq.s32.totalorder %s16, 0
      %p43 = por %p41, %p42
      %s44 = ssub.s32 %s10, %s17
      %p45 = scmp.eq.s32.totalorder %s44, 0
      %s47 = sadd.s32 %s46, 1
      %s48 = scalar_select %p45, %s46, %s47
      %p51 = pneg %p45
      %p52 = scmp.eq.s32.totalorder %s10, 1
      %p53 = por %p51, %p52
      %p54 = scmp.ne.s32.totalorder %s46, %s49
      %p55 = scmp.eq.s32.totalorder %s10, 0
      %p56 = por %p54, %p55
      %p57 = scmp.ne.s32.totalorder %s46, %s49
      %p58 = scmp.eq.s32.totalorder %s15, 1
      %p59 = por %p57, %p58
      %p60 = scmp.ne.s32.totalorder %s49, %s50
      %p61 = scmp.eq.s32.totalorder %s15, 0
      %p62 = por %p60, %p61
      %p63 = scmp.ne.s32.totalorder %s49, %s50
      %p64 = scmp.eq.s32.totalorder %s16, 1
      %p65 = por %p63, %p64
      %p67 = scmp.ne.s32.totalorder %s50, %s66
      %p68 = scmp.eq.s32.totalorder %s16, 0
      %p69 = por %p67, %p68
      %p70 = scmp.le.s32.totalorder 1, %s10
      %p71 = scmp.lt.s32.totalorder %s10, 3
      %p72 = pnand %p70, %p71
      %p73 = pneg %p72
      // Predicated region
      $region9: #{tpu_custom_call.1} parent=5 // pred_check
        _
      $region10: #{tpu_custom_call.1} parent=5 // pred_check_branch
        %75 = sbr.rel (%p72) target = $region12
      $region11: #{tpu_custom_call.1} parent=5 // pred_region
        %s76 = ssub.s32 %s10, 1
      $region12: #{tpu_custom_call.1} parent=5 // pred_fallthru
        _
      %p77 = scmp.lt.s32.totalorder %s10, 2
      // Predicated region
      $region13: #{tpu_custom_call.1} parent=5 // pred_check
        %p78 = pneg %p77
      $region14: #{tpu_custom_call.1} parent=5 // pred_check_branch
        %80 = sbr.rel (%p78) target = $region16
      $region15: #{tpu_custom_call.1} parent=5 // pred_region
        // Predicated region
        $region17: #{tpu_custom_call.1} parent=15 // pred_check
          %p81 = pneg %p30
        $region18: #{tpu_custom_call.1} parent=15 // pred_check_branch
          %83 = sbr.rel (%p81) target = $region20
        $region19: #{tpu_custom_call.1} parent=15 // pred_region
          %s84 = sand.u32 %s20, 1
          %s85 = scalar_lea.sflag [#allocation3], %s84
          %s86 = sand.u32 %s20, 1
          %s87 = smul.addr %s86, 8
          %s88 = scalar_lea.vmem [#allocation2], %s87
          %s90 = ssub.s32 128, 128
          %91 = vsyncadd %s85, %s90
          %s92 = smul.addr %s10, 2
          %s93 = smul.addr %s92, 64
          %s94 = scalar_lea.hbm %s0, %s93
          %s96 = sshll.u32 %s88, 4
          %s97 = int_to_ptr.vmem [resolvable:$true] %s96
          %99 = dma.hbm_to_vmem [thread:$0]  %s94, 128, %s97, %s85
        $region20: #{tpu_custom_call.1} parent=15 // pred_fallthru
          _
      $region16: #{tpu_custom_call.1} parent=5 // pred_fallthru
        _
      %p100 = scmp.le.s32.totalorder 1, %s10
      %p101 = scmp.lt.s32.totalorder %s10, 3
      %p102 = pnand %p100, %p101
      %p103 = pneg %p102
      // Predicated region
      $region21: #{tpu_custom_call.1} parent=5 // pred_check
        _
      $region22: #{tpu_custom_call.1} parent=5 // pred_check_branch
        %105 = sbr.rel (%p102) target = $region24
      $region23: #{tpu_custom_call.1} parent=5 // pred_region
        %s106 = ssub.s32 %s10, 1
        %s107 = sand.u32 %s23, 1
        %s108 = scalar_lea.sflag [#allocation3], %s107
        %s109 = sand.u32 %s23, 1
        %s110 = smul.addr %s109, 8
        %s111 = scalar_lea.vmem [#allocation2], %s110
        // Predicated region
        $region25: #{tpu_custom_call.1} parent=23 // pred_check
          %p112 = pneg %p36
        $region26: #{tpu_custom_call.1} parent=23 // pred_check_branch
          %114 = sbr.rel (%p112) target = $region28
        $region27: #{tpu_custom_call.1} parent=23 // pred_region
          %115 = dma.done %s108, 128
        $region28: #{tpu_custom_call.1} parent=23 // pred_fallthru
          _
        %s116 = sand.u32 %s23, 1
        %s117 = scalar_lea.sflag [#allocation3], %s116
        %s118 = sand.u32 %s23, 1
        %s119 = smul.addr %s118, 8
        %s120 = scalar_lea.vmem [#allocation2], %s119
        %p121 = pneg %p36
        %p122 = pneg %p33
        %p123 = pneg %p62
        %p124 = pneg %p59
        %p125 = scmp.lt.s32.totalorder %s15, 1
        %s126 = scalar_select %p125, %s15, 1
        %s127 = smul.addr %s126, 8
        %s128 = scalar_lea.vmem %s1, %s127
        %p129 = scmp.lt.s32.totalorder %s15, 1
        %s130 = scalar_select %p129, %s15, 1
        %s131 = smul.addr %s130, 8
        %s132 = scalar_lea.vmem %s1, %s131
        %v133 = vld [vmem:[%s111] sm:$0xff]
        %v134 = vmul.f32 %v133, %v133
        %v136 = vcombine.high %v133, %v133
        %v139 = vcombine.low %v134, %v134
        %vm141 = vcmask 1043456
        %v142 = vsel %vm141, %v133, %v139
        %v143 = vsel %vm141, %v136, %v134
        %144 = vmatprep.subr.mxu0 0.0
        %145 = vmatpush1.msra.mxu0 1.0
        %146 = vmatprep.subr.mxu0 0.0
        %147 = vmatpush1.msra.mxu0 1.0
        %148 = vmatprep.subr.mxu0 0.0
        %149 = vmatpush1.msra.mxu0 1.0
        %150 = vmatprep.subr.mxu0 0.0
        %151 = vmatpush1.msra.mxu0 1.0
        %152 = vmatprep.subr.mxu0 0.0
        %153 = vmatpush1.msra.mxu0 1.0
        %154 = vmatprep.subr.mxu0 0.0
        %155 = vmatpush1.msra.mxu0 1.0
        %156 = vmatprep.subr.mxu0 0.0
        %157 = vmatpush1.msra.mxu0 1.0
        %158 = vmatprep.subr.mxu0 0.0
        %159 = vmatpush1.msra.mxu0 1.0
        %160 = vmatprep.subr.mxu0 0.0
        %161 = vmatpush1.msra.mxu0 1.0
        %162 = vmatprep.subr.mxu0 0.0
        %163 = vmatpush1.msra.mxu0 1.0
        %164 = vmatprep.subr.mxu0 0.0
        %165 = vmatpush1.msra.mxu0 1.0
        %166 = vmatprep.subr.mxu0 0.0
        %167 = vmatpush1.msra.mxu0 1.0
        %168 = vmatprep.subr.mxu0 0.0
        %169 = vmatpush1.msra.mxu0 1.0
        %170 = vmatprep.subr.mxu0 0.0
        %171 = vmatpush1.msra.mxu0 1.0
        %172 = vmatprep.subr.mxu0 0.0
        %173 = vmatpush1.msra.mxu0 1.0
        %174 = vmatprep.subr.mxu0 0.0
        %175 = vmatpush1.msra.mxu0 1.0
        %176 = vmatprep.subr.mxu0 0.0
        %177 = vmatpush1.msra.mxu0 1.0
        %178 = vmatprep.subr.mxu0 0.0
        %179 = vmatpush1.msra.mxu0 1.0
        %180 = vmatprep.subr.mxu0 0.0
        %181 = vmatpush1.msra.mxu0 1.0
        %182 = vmatprep.subr.mxu0 0.0
        %183 = vmatpush1.msra.mxu0 1.0
        %184 = vmatprep.subr.mxu0 0.0
        %185 = vmatpush1.msra.mxu0 1.0
        %186 = vmatprep.subr.mxu0 0.0
        %187 = vmatpush1.msra.mxu0 1.0
        %188 = vmatprep.subr.mxu0 0.0
        %189 = vmatpush1.msra.mxu0 1.0
        %190 = vmatprep.subr.mxu0 0.0
        %191 = vmatpush1.msra.mxu0 1.0
        %192 = vmatprep.subr.mxu0 0.0
        %193 = vmatpush1.msra.mxu0 1.0
        %194 = vmatprep.subr.mxu0 0.0
        %195 = vmatpush1.msra.mxu0 1.0
        %196 = vmatprep.subr.mxu0 0.0
        %197 = vmatpush1.msra.mxu0 1.0
        %198 = vmatprep.subr.mxu0 0.0
        %199 = vmatpush1.msra.mxu0 1.0
        %200 = vmatprep.subr.mxu0 0.0
        %201 = vmatpush1.msra.mxu0 1.0
        %202 = vmatprep.subr.mxu0 0.0
        %203 = vmatpush1.msra.mxu0 1.0
        %204 = vmatprep.subr.mxu0 0.0
        %205 = vmatpush1.msra.mxu0 1.0
        %206 = vmatprep.subr.mxu0 0.0
        %207 = vmatpush1.msra.mxu0 1.0
        %208 = vmatprep.mubr.f32.mxu0 %v143
        %209 = vmatmul.mubr.f32.gmra.mrb[0].mxu0 %v142
        %v210 = vpop.f32.mrb[0].mxu0
        %v211 = vadd.f32 0.0, %v210
        %v212 = vpop.f32.mrb[0].mxu0
        %213 = vdwg.mxu0
        %vm214 = vcmask 7168
        %215 = vst.msk [vmem:[%s132] sm:$0xff] %vm214, %v211
        %p216 = scmp.lt.s32.totalorder %s15, 1
        %s217 = scalar_select %p216, %s15, 1
        %s218 = smul.addr %s217, 8
        %s219 = scalar_lea.vmem %s1, %s218
        // Predicated region
        $region29: #{tpu_custom_call.1} parent=23 // pred_check
          %p220 = pneg %p59
        $region30: #{tpu_custom_call.1} parent=23 // pred_check_branch
          %222 = sbr.rel (%p220) target = $region32
        $region31: #{tpu_custom_call.1} parent=23 // pred_region
          _
        $region32: #{tpu_custom_call.1} parent=23 // pred_fallthru
          _
      $region24: #{tpu_custom_call.1} parent=5 // pred_fallthru
        _
      %p223 = scmp.le.s32.totalorder 2, %s10
      // Predicated region
      $region33: #{tpu_custom_call.1} parent=5 // pred_check
        %p224 = pneg %p223
      $region34: #{tpu_custom_call.1} parent=5 // pred_check_branch
        %226 = sbr.rel (%p224) target = $region36
      $region35: #{tpu_custom_call.1} parent=5 // pred_region
        %s227 = ssub.s32 %s10, 2
        // Predicated region
        $region37: #{tpu_custom_call.1} parent=35 // pred_check
          %p228 = pneg %p65
        $region38: #{tpu_custom_call.1} parent=35 // pred_check_branch
          %230 = sbr.rel (%p228) target = $region40
        $region39: #{tpu_custom_call.1} parent=35 // pred_region
          %p231 = scmp.lt.s32.totalorder %s16, 1
          %s232 = scalar_select %p231, %s16, 1
          %s233 = smul.addr %s232, 8
          %s234 = scalar_lea.vmem %s1, %s233
        $region40: #{tpu_custom_call.1} parent=35 // pred_fallthru
          _
      $region36: #{tpu_custom_call.1} parent=5 // pred_fallthru
        _
    $region6: #{tpu_custom_call.1} parent=1 // loop_footer
      %s14 = sadd.s32 1, %s10
    $region7: #{tpu_custom_call.1} parent=1 // loop_footer_branch
      %9 = sbr.rel target = $region3
    $region8: #{tpu_custom_call.1} parent=1 // loop_exit
      _
    %235 = vsyncpa [#allocation3], 1
    %s236 = scalar_lea.sflag [#allocation3], 1
    %237 = vsyncpa %s236, 1

</llo_original>
